<compile_context>
chip_gen: v5e
topology: v5e:2x2
jax: 0.10.0
libtpu: 0.0.40
codegen_flags: <defaults>
</compile_context>

<pallas_src>
import functools
import inspect
import math

import jax
import jax.numpy as jnp
from jax import lax
from jax.experimental import pallas as pl
from jax.experimental.pallas import tpu as pltpu


try:
    _HAS_BUFFERED = hasattr(pl, "Buffered") and (
        "pipeline_mode" in inspect.signature(pl.BlockSpec).parameters
    )
except Exception:  # pragma: no cover
    _HAS_BUFFERED = False


def _round_up(x: int, m: int) -> int:
    return ((x + m - 1) // m) * m


def _sublane_multiple(itemsize: int) -> int:
    # Sub-32-bit dtypes pack along sublanes: f32 -> 8, bf16 -> 16, int8/fp8 -> 32.
    return max(8, (32 // (8 * itemsize)) * 8)


def _plan_tiling(q_len, k_pad, d_pad, itemsize, budget_bytes, batch):
    """Pick (tq, kv_buffer_count, attn_out_buffer_count) under a VMEM budget."""
    sub = _sublane_multiple(itemsize)

    def vmem_bytes(tq, kv_bufs, attn_bufs):
        q_in = 2 * tq * d_pad * itemsize                       # double-buffered Q tile
        kv_in = kv_bufs * 2 * k_pad * d_pad * itemsize         # K and V
        ctx_o = 2 * tq * d_pad * itemsize                      # ctx out tile
        attn_o = attn_bufs * tq * k_pad * itemsize             # attn out tile
        f32tmp = 3 * tq * k_pad * 4                            # score / e / attn f32
        return q_in + kv_in + ctx_o + attn_o + f32tmp

    # Query-tile upper bound: full (padded) q_len, capped at 512.  If B == 1 make sure
    # there are >= 2 q tiles so both v7x TensorCores get work.
    tq_cap = min(512, _round_up(q_len, sub))
    if batch == 1 and q_len > sub:
        tq_cap = min(tq_cap, _round_up(-(-q_len // 2), sub))

    def pick_tq(kv_bufs):
        tq = tq_cap
        while tq > sub and vmem_bytes(tq, kv_bufs, 2) > budget_bytes:
            tq -= sub
        return tq

    kv_bufs = 2
    tq = pick_tq(kv_bufs)
    if vmem_bytes(tq, kv_bufs, 2) > budget_bytes:
        # K/V dominate: single-buffer them (their block is constant across q tiles, so
        # only one DMA per batch index is needed anyway).
        kv_bufs = 1
        tq = pick_tq(kv_bufs)
    # TODO(synk): if even tq == sub with single-buffered K/V exceeds the budget (very
    # long k_len on v7x), a flash-style k-tiled online-softmax kernel is required.

    attn_bufs = 3 if vmem_bytes(tq, kv_bufs, 3) <= budget_bytes else 2
    return tq, kv_bufs, attn_bufs


def _block_spec(shape, index_map, buffers=2):
    if buffers != 2 and _HAS_BUFFERED:
        return pl.BlockSpec(shape, index_map, pipeline_mode=pl.Buffered(buffers))
    return pl.BlockSpec(shape, index_map)


def _sdpa_kernel(q_ref, k_ref, v_ref, ctx_ref, attn_ref, *, inv_sqrt_dim, k_len):
    # Block shapes: q (1, TQ, Dp), k/v (1, Kp, Dp), ctx (1, TQ, Dp), attn (1, TQ, Kp).
    # Fold 1/sqrt(d) into Q in the input dtype (keeps the bf16 MXU fast path; TQ*D
    # multiplies instead of TQ*k_len).
    q = q_ref[0] * jnp.asarray(inv_sqrt_dim, dtype=q_ref.dtype)   # (TQ, Dp)
    k = k_ref[0]                                                  # (Kp, Dp)
    v = v_ref[0]                                                  # (Kp, Dp)

    # score = (Q / sqrt(d)) @ K^T: contract the feature dims directly (no explicit K
    # transpose), f32 accumulation on the MXU.
    score = lax.dot_general(
        q, k,
        dimension_numbers=(((1,), (1,)), ((), ())),
        preferred_element_type=jnp.float32,
    )                                                             # (TQ, Kp) f32

    k_pad = score.shape[-1]
    if k_pad != k_len:  # static: mask zero-padded key columns out of the softmax
        col = lax.broadcasted_iota(jnp.int32, score.shape, 1)
        score = jnp.where(col < k_len, score, -1e30)

    # Numerically-stable softmax over the key axis. Exact reciprocal: attn is an
    # exported output and its rows must sum to 1 (kernel is store-bound, so this is
    # effectively free).
    m = jnp.max(score, axis=-1, keepdims=True)
    e = jnp.exp(score - m)
    denom = jnp.sum(e, axis=-1, keepdims=True)
    attn_f32 = e * pl.reciprocal(denom)

    # Cast once and reuse for both the PV matmul and the attn writeback.
    attn_lp = attn_f32.astype(attn_ref.dtype)
    pv_lhs = attn_lp if v.dtype == attn_ref.dtype else attn_f32.astype(v.dtype)
    ctx = jnp.dot(pv_lhs, v, preferred_element_type=jnp.float32)  # (TQ, Dp) f32

    ctx_ref[0] = ctx.astype(ctx_ref.dtype)
    attn_ref[0] = attn_lp


def scaled_dot_product_attention(query, key, value):
    """query: (B, q_len, d), key/value: (B, k_len, d).
    Returns (context: (B, q_len, d), attn: (B, q_len, k_len))."""
    B, q_len, d_model = query.shape
    _, k_len, _ = key.shape
    inv_sqrt_dim = 1.0 / math.sqrt(d_model)
    itemsize = jnp.dtype(query.dtype).itemsize

    # Lane-dense (multiple-of-128) last dims for MXU feeds and unmasked stores.
    d_pad = _round_up(d_model, 128)
    k_pad = _round_up(k_len, 128)

    # Generation-aware VMEM policy.
    try:
        vmem_phys = int(pltpu.get_tpu_info().vmem_capacity_bytes)
    except Exception:
        vmem_phys = 64 * 1024 * 1024            # conservative (v7x per-core VMEM)
    vmem_limit = min(int(vmem_phys * 0.6), 64 * 1024 * 1024)
    budget = int(vmem_limit * 0.85)             # headroom for compiler scratch

    tq, kv_bufs, attn_bufs = _plan_tiling(q_len, k_pad, d_pad, itemsize, budget, B)
    q_len_pad = _round_up(q_len, tq)

    qp = query
    if (q_len_pad, d_pad) != (q_len, d_model):
        qp = jnp.pad(query, ((0, 0), (0, q_len_pad - q_len), (0, d_pad - d_model)))
    kp, vp = key, value
    if (k_pad, d_pad) != (k_len, d_model):
        kp = jnp.pad(key, ((0, 0), (0, k_pad - k_len), (0, d_pad - d_model)))
        vp = jnp.pad(value, ((0, 0), (0, k_pad - k_len), (0, d_pad - d_model)))

    kernel = functools.partial(_sdpa_kernel, inv_sqrt_dim=inv_sqrt_dim, k_len=k_len)

    def _call(use_buffered):
        kvb = kv_bufs if use_buffered else 2
        atb = attn_bufs if use_buffered else 2
        return pl.pallas_call(
            kernel,
            out_shape=(
                jax.ShapeDtypeStruct((B, q_len_pad, d_pad), query.dtype),
                jax.ShapeDtypeStruct((B, q_len_pad, k_pad), query.dtype),
            ),
            grid_spec=pltpu.PrefetchScalarGridSpec(
                num_scalar_prefetch=0,
                grid=(B, q_len_pad // tq),
                in_specs=[
                    _block_spec((1, tq, d_pad), lambda b, qi: (b, qi, 0)),
                    _block_spec((1, k_pad, d_pad), lambda b, qi: (b, 0, 0), kvb),
                    _block_spec((1, k_pad, d_pad), lambda b, qi: (b, 0, 0), kvb),
                ],
                out_specs=[
                    _block_spec((1, tq, d_pad), lambda b, qi: (b, qi, 0)),
                    _block_spec((1, tq, k_pad), lambda b, qi: (b, qi, 0), atb),
                ],
            ),
            compiler_params=pltpu.CompilerParams(
                dimension_semantics=("parallel", "parallel"),
                vmem_limit_bytes=vmem_limit,
            ),
        )(qp, kp, vp)

    want_buffered = _HAS_BUFFERED and (kv_bufs != 2 or attn_bufs != 2)
    if want_buffered:
        try:
            ctx_p, attn_p = _call(True)
        except Exception:
            # pipeline_mode not honored by this backend/version -> default buffering.
            ctx_p, attn_p = _call(False)
    else:
        ctx_p, attn_p = _call(False)

    ctx = ctx_p[:, :q_len, :d_model] if (q_len_pad, d_pad) != (q_len, d_model) else ctx_p
    attn = attn_p[:, :q_len, :k_len] if (q_len_pad, k_pad) != (q_len, k_len) else attn_p
    return ctx, attn


def _reference(query, key, value):
    d = query.shape[-1]
    score = jnp.einsum("bqd,bkd->bqk", query, key) / math.sqrt(d)
    attn = jax.nn.softmax(score, axis=-1)
    ctx = jnp.einsum("bqk,bkd->bqd", attn, value)
    return ctx, attn


if __name__ == "__main__":
    # Small deterministic inputs: batch=2, q_len=k_len=8, d_model=32
    key0 = jax.random.PRNGKey(0)
    kq, kk, kv = jax.random.split(key0, 3)
    B, S, D = 2, 8, 32
    query = jax.random.normal(kq, (B, S, D), dtype=jnp.float32)
    key_ = jax.random.normal(kk, (B, S, D), dtype=jnp.float32)
    value = jax.random.normal(kv, (B, S, D), dtype=jnp.float32)

    ctx, attn = scaled_dot_product_attention(query, key_, value)
    jax.block_until_ready((ctx, attn))

    ctx_ref, attn_ref = _reference(query, key_, value)
    assert ctx.shape == (B, S, D) and attn.shape == (B, S, S)
    assert jnp.allclose(ctx, ctx_ref, atol=2e-3, rtol=2e-3)
    assert jnp.allclose(attn, attn_ref, atol=2e-3, rtol=2e-3)

    print("KERNEL_OK")
</pallas_src>

<mosaic_0001>
module attributes {stable_mosaic.version = 11 : i64} {
  func.func @_sdpa_kernel(%arg0: i32, %arg1: i32, %arg2: memref<1x8x128xf32, #tpu.memory_space<vmem>>, %arg3: memref<1x128x128xf32, #tpu.memory_space<vmem>>, %arg4: memref<1x128x128xf32, #tpu.memory_space<vmem>>, %arg5: memref<1x8x128xf32, #tpu.memory_space<vmem>>, %arg6: memref<1x8x128xf32, #tpu.memory_space<vmem>>) attributes {dimension_semantics = [#tpu.dimension_semantics<parallel>, #tpu.dimension_semantics<parallel>], iteration_bounds = array<i64: 2, 1>, scalar_prefetch = 0 : i64, scratch_operands = 0 : i64, tpu.core_type = #tpu.core_type<tc>, window_params = [{transform_indices = @transform_0, window_bounds = array<i64: 1, 8, 128>}, {transform_indices = @transform_1, window_bounds = array<i64: 1, 128, 128>}, {transform_indices = @transform_2, window_bounds = array<i64: 1, 128, 128>}, {transform_indices = @transform_3, window_bounds = array<i64: 1, 8, 128>}, {transform_indices = @transform_4, window_bounds = array<i64: 1, 8, 128>}]} {
    %c0 = arith.constant 0 : index
    %c0_0 = arith.constant 0 : index
    %c0_1 = arith.constant 0 : index
    %0 = vector.load %arg2[%c0, %c0_0, %c0_1] : memref<1x8x128xf32, #tpu.memory_space<vmem>>, vector<1x8x128xf32>
    %1 = vector.shape_cast %0 : vector<1x8x128xf32> to vector<8x128xf32>
    %cst = arith.constant 0.176776692 : f32
    %2 = vector.broadcast %cst : f32 to vector<8x128xf32>
    %3 = arith.mulf %1, %2 : vector<8x128xf32>
    %c0_2 = arith.constant 0 : index
    %c0_3 = arith.constant 0 : index
    %c0_4 = arith.constant 0 : index
    %4 = vector.load %arg3[%c0_2, %c0_3, %c0_4] : memref<1x128x128xf32, #tpu.memory_space<vmem>>, vector<1x128x128xf32>
    %5 = vector.shape_cast %4 : vector<1x128x128xf32> to vector<128x128xf32>
    %c0_5 = arith.constant 0 : index
    %c0_6 = arith.constant 0 : index
    %c0_7 = arith.constant 0 : index
    %6 = vector.load %arg4[%c0_5, %c0_6, %c0_7] : memref<1x128x128xf32, #tpu.memory_space<vmem>>, vector<1x128x128xf32>
    %7 = vector.shape_cast %6 : vector<1x128x128xf32> to vector<128x128xf32>
    %cst_8 = arith.constant dense<0.000000e+00> : vector<8x128xf32>
    %8 = tpu.matmul %3, %5, %cst_8 {dimension_numbers = #tpu.dot_dimension_numbers<[1], [1], [0], [0], [0, 0, 1, 0], [], []>} : vector<8x128xf32>, vector<128x128xf32>, vector<8x128xf32> -> vector<8x128xf32>
    %9 = tpu.iota {dimensions = array<i32: 1>} : vector<8x128xi32>
    %c8_i32 = arith.constant 8 : i32
    %10 = vector.broadcast %c8_i32 : i32 to vector<8x128xi32>
    %11 = arith.cmpi slt, %9, %10 : vector<8x128xi32>
    %cst_9 = arith.constant -1.000000e+30 : f32
    %12 = vector.broadcast %cst_9 : f32 to vector<8x128xf32>
    %13 = arith.select %11, %8, %12 : vector<8x128xi1>, vector<8x128xf32>
    %cst_10 = arith.constant dense<0xFF800000> : vector<8xf32>
    %14 = vector.multi_reduction <maximumf>, %13, %cst_10 [1] : vector<8x128xf32> to vector<8xf32>
    %15 = vector.shape_cast %14 : vector<8xf32> to vector<8x1xf32>
    %16 = vector.broadcast %15 : vector<8x1xf32> to vector<8x128xf32>
    %17 = arith.subf %13, %16 : vector<8x128xf32>
    %18 = math.exp %17 : vector<8x128xf32>
    %cst_11 = arith.constant dense<0.000000e+00> : vector<8xf32>
    %19 = vector.multi_reduction <add>, %18, %cst_11 [1] : vector<8x128xf32> to vector<8xf32>
    %20 = vector.shape_cast %19 : vector<8xf32> to vector<8x1xf32>
    %21 = tpu.reciprocal %20 : vector<8x1xf32> -> vector<8x1xf32>
    %22 = vector.broadcast %21 : vector<8x1xf32> to vector<8x128xf32>
    %23 = arith.mulf %18, %22 : vector<8x128xf32>
    %cst_12 = arith.constant dense<0.000000e+00> : vector<8x128xf32>
    %24 = tpu.matmul %23, %7, %cst_12 {dimension_numbers = #tpu.dot_dimension_numbers<[1], [0], [0], [1], [0, 0, 1, 1], [], []>} : vector<8x128xf32>, vector<128x128xf32>, vector<8x128xf32> -> vector<8x128xf32>
    %c0_13 = arith.constant 0 : index
    %c0_14 = arith.constant 0 : index
    %c0_15 = arith.constant 0 : index
    %25 = vector.load %arg5[%c0_13, %c0_14, %c0_15] : memref<1x8x128xf32, #tpu.memory_space<vmem>>, vector<1x8x128xf32>
    %26 = vector.shape_cast %25 : vector<1x8x128xf32> to vector<8x128xf32>
    %27 = vector.shape_cast %24 : vector<8x128xf32> to vector<1x8x128xf32>
    tpu.vector_store %arg5[%c0_13, %c0_14, %c0_15], %27 {strides = array<i32>} : memref<1x8x128xf32, #tpu.memory_space<vmem>>, vector<1x8x128xf32>,
    %c0_16 = arith.constant 0 : index
    %c0_17 = arith.constant 0 : index
    %c0_18 = arith.constant 0 : index
    %28 = vector.load %arg6[%c0_16, %c0_17, %c0_18] : memref<1x8x128xf32, #tpu.memory_space<vmem>>, vector<1x8x128xf32>
    %29 = vector.shape_cast %28 : vector<1x8x128xf32> to vector<8x128xf32>
    %30 = vector.shape_cast %23 : vector<8x128xf32> to vector<1x8x128xf32>
    tpu.vector_store %arg6[%c0_16, %c0_17, %c0_18], %30 {strides = array<i32>} : memref<1x8x128xf32, #tpu.memory_space<vmem>>, vector<1x8x128xf32>,
    return
  }
  func.func @transform_0(%arg0: i32, %arg1: i32) -> (i32, i32, i32) {
    %c0_i32 = arith.constant 0 : i32
    %c0_i32_0 = arith.constant 0 : i32
    return %arg0, %arg1, %c0_i32 : i32, i32, i32
  }
  func.func @transform_1(%arg0: i32, %arg1: i32) -> (i32, i32, i32) {
    %c0_i32 = arith.constant 0 : i32
    %c0_i32_0 = arith.constant 0 : i32
    %c0_i32_1 = arith.constant 0 : i32
    return %arg0, %c0_i32, %c0_i32_0 : i32, i32, i32
  }
  func.func @transform_2(%arg0: i32, %arg1: i32) -> (i32, i32, i32) {
    %c0_i32 = arith.constant 0 : i32
    %c0_i32_0 = arith.constant 0 : i32
    %c0_i32_1 = arith.constant 0 : i32
    return %arg0, %c0_i32, %c0_i32_0 : i32, i32, i32
  }
  func.func @transform_3(%arg0: i32, %arg1: i32) -> (i32, i32, i32) {
    %c0_i32 = arith.constant 0 : i32
    %c0_i32_0 = arith.constant 0 : i32
    return %arg0, %arg1, %c0_i32 : i32, i32, i32
  }
  func.func @transform_4(%arg0: i32, %arg1: i32) -> (i32, i32, i32) {
    %c0_i32 = arith.constant 0 : i32
    %c0_i32_0 = arith.constant 0 : i32
    return %arg0, %arg1, %c0_i32 : i32, i32, i32
  }
}

</mosaic_0001>

<llo_original>
// kernel: tpu_custom_call.1
$region0: #{tpu_custom_call.1}
  #allocation0 [shape = 'u32[]', space=smem, size = 0x4, offset = 0x4, fixed_abs, tag = 'smem constant byte address 0x4 - core index']
  #allocation1 [shape = 'u32[72,128]{1,0:T(1,128)}', space=vmem, size = 0x9000, scoped, tag = 'internal scratch']
  %s0 = inlined_call_operand.hbm [shape: f32[2,8,128], index: 0, kind: input, shape index: {}]
  %s1 = inlined_call_operand.hbm [shape: f32[2,128,128], index: 1, kind: input, shape index: {}]
  %s2 = inlined_call_operand.hbm [shape: f32[2,128,128], index: 2, kind: input, shape index: {}]
  %s3 = inlined_call_operand.hbm [shape: f32[2,8,128], index: 3, kind: output, shape index: {0}]
  %s4 = inlined_call_operand.hbm [shape: f32[2,8,128], index: 4, kind: output, shape index: {1}]
  %5 = xla_tuple %s3, %s4
  %s6 = sld [smem:[#allocation0]]
  $region65: #{tpu_custom_call.1} parent=0
    _
  %s8 = ssub.s32 1, %s6
  %s9 = scalar_select 0, %s8, %s6
  $region1: #{tpu_custom_call.1} parent=0
    #allocation2 [shape = 'u8[8192]{0}', space=vmem, size = 0x2000, scoped, tag = 'input window, operand 0']
    #allocation3 [shape = 's32[2]{0}', space=sflag, size = 0x8, scoped, tag = 'scoped memory for tpu_custom_call.1']
    #allocation4 [shape = 's32[2]{0}', space=sflag, size = 0x8, scoped, tag = 'scoped memory for tpu_custom_call.1']
    #allocation5 [shape = 'u8[131072]{0}', space=vmem, size = 0x20000, scoped, tag = 'input window, operand 1']
    #allocation6 [shape = 's32[2]{0}', space=sflag, size = 0x8, scoped, tag = 'scoped memory for tpu_custom_call.1']
    #allocation7 [shape = 'u8[131072]{0}', space=vmem, size = 0x20000, scoped, tag = 'input window, operand 2']
    #allocation8 [shape = 'u8[8192]{0}', space=vmem, size = 0x2000, scoped, tag = 'output window, operand 0']
    #allocation9 [shape = 'u8[8192]{0}', space=vmem, size = 0x2000, scoped, tag = 'output window, operand 1']
    #allocation10 [shape = 's32[2]{0}', space=sflag, size = 0x8, scoped, tag = 'scoped memory for tpu_custom_call.1']
    %10 = vsyncpa [#allocation3], 0
    %s11 = scalar_lea.sflag [#allocation3], 1
    %12 = vsyncpa %s11, 0
    %13 = vsyncpa [#allocation6], 0
    %s14 = scalar_lea.sflag [#allocation6], 1
    %15 = vsyncpa %s14, 0
    %16 = vsyncpa [#allocation4], 0
    %s17 = scalar_lea.sflag [#allocation4], 1
    %18 = vsyncpa %s17, 0
    %19 = vsyncpa [#allocation10], 0
    %s20 = scalar_lea.sflag [#allocation10], 1
    %21 = vsyncpa %s20, 0
    loop: start=0, step=1, limit=4
    $region2: #{tpu_custom_call.1} parent=1 // loop_pre_header
      _
    $region3: #{tpu_custom_call.1} parent=1 // loop_header
      %s23 = sphi 0, %s27
      %p24 = scmp.ge.s32.totalorder %s23, 4
      %s30 = sphi 0, %s42
      %s31 = sphi 0, %s38
      %s32 = sphi 0, %s30
      %s33 = sphi 0, %s31
      %s34 = sphi 0, %s32
      %s35 = sphi 0, %s33
      %s47 = sphi 0, %s49
      %s50 = sphi 0, %s47
      %s51 = sphi 0, %s50
      %s67 = sphi 0, %s51
      %s73 = sphi 0, %s75
      %s76 = sphi 0, %s73
      %s77 = sphi 0, %s76
      %s93 = sphi 0, %s77
      %s99 = sphi 0, %s101
      %s102 = sphi 0, %s99
      %s103 = sphi 0, %s102
      %s119 = sphi 0, %s103
      %s127 = sphi 0, %s129
      %s130 = sphi 0, %s127
      %s131 = sphi 0, %s130
      %s147 = sphi 0, %s131
      %s155 = sphi 0, %s157
      %s158 = sphi 0, %s155
      %s159 = sphi 0, %s158
      %s175 = sphi 0, %s159
    $region4: #{tpu_custom_call.1} parent=1 // loop_header_branch
      %26 = sbr.rel (%p24) target = $region8
    $region5: #{tpu_custom_call.1} parent=1 // loop_body
      %s28 = ssub.s32 %s23, 1
      %s29 = ssub.s32 %s23, 2
      %s36 = sadd.s32 1, %s31
      %p37 = scmp.ge.s32.totalorder %s36, 1
      %s38 = scalar_select %p37, 0, %s36
      %s39 = sadd.s32 1, %s30
      %s40 = scalar_select %p37, %s39, %s30
      %p41 = scmp.ge.s32.totalorder %s40, 2
      %s42 = scalar_select %p41, 0, %s40
      %s43 = ssub.s32 %s30, %s42
      %s44 = ssub.s32 %s31, %s38
      %s45 = sor.u32 %s43, %s44
      %p46 = scmp.eq.s32.totalorder %s45, 0
      %s48 = sadd.s32 %s47, 1
      %s49 = scalar_select %p46, %s47, %s48
      %p52 = pneg %p46
      %p53 = scmp.eq.s32.totalorder %s23, 1
      %p54 = por %p52, %p53
      %p55 = scmp.ne.s32.totalorder %s47, %s50
      %p56 = scmp.eq.s32.totalorder %s23, 0
      %p57 = por %p55, %p56
      %p58 = scmp.ne.s32.totalorder %s47, %s50
      %p59 = scmp.eq.s32.totalorder %s28, 1
      %p60 = por %p58, %p59
      %p61 = scmp.ne.s32.totalorder %s50, %s51
      %p62 = scmp.eq.s32.totalorder %s28, 0
      %p63 = por %p61, %p62
      %p64 = scmp.ne.s32.totalorder %s50, %s51
      %p65 = scmp.eq.s32.totalorder %s29, 1
      %p66 = por %p64, %p65
      %p68 = scmp.ne.s32.totalorder %s51, %s67
      %p69 = scmp.eq.s32.totalorder %s29, 0
      %p70 = por %p68, %p69
      %s71 = ssub.s32 %s30, %s42
      %p72 = scmp.eq.s32.totalorder %s71, 0
      %s74 = sadd.s32 %s73, 1
      %s75 = scalar_select %p72, %s73, %s74
      %p78 = pneg %p72
      %p79 = scmp.eq.s32.totalorder %s23, 1
      %p80 = por %p78, %p79
      %p81 = scmp.ne.s32.totalorder %s73, %s76
      %p82 = scmp.eq.s32.totalorder %s23, 0
      %p83 = por %p81, %p82
      %p84 = scmp.ne.s32.totalorder %s73, %s76
      %p85 = scmp.eq.s32.totalorder %s28, 1
      %p86 = por %p84, %p85
      %p87 = scmp.ne.s32.totalorder %s76, %s77
      %p88 = scmp.eq.s32.totalorder %s28, 0
      %p89 = por %p87, %p88
      %p90 = scmp.ne.s32.totalorder %s76, %s77
      %p91 = scmp.eq.s32.totalorder %s29, 1
      %p92 = por %p90, %p91
      %p94 = scmp.ne.s32.totalorder %s77, %s93
      %p95 = scmp.eq.s32.totalorder %s29, 0
      %p96 = por %p94, %p95
      %s97 = ssub.s32 %s30, %s42
      %p98 = scmp.eq.s32.totalorder %s97, 0
      %s100 = sadd.s32 %s99, 1
      %s101 = scalar_select %p98, %s99, %s100
      %p104 = pneg %p98
      %p105 = scmp.eq.s32.totalorder %s23, 1
      %p106 = por %p104, %p105
      %p107 = scmp.ne.s32.totalorder %s99, %s102
      %p108 = scmp.eq.s32.totalorder %s23, 0
      %p109 = por %p107, %p108
      %p110 = scmp.ne.s32.totalorder %s99, %s102
      %p111 = scmp.eq.s32.totalorder %s28, 1
      %p112 = por %p110, %p111
      %p113 = scmp.ne.s32.totalorder %s102, %s103
      %p114 = scmp.eq.s32.totalorder %s28, 0
      %p115 = por %p113, %p114
      %p116 = scmp.ne.s32.totalorder %s102, %s103
      %p117 = scmp.eq.s32.totalorder %s29, 1
      %p118 = por %p116, %p117
      %p120 = scmp.ne.s32.totalorder %s103, %s119
      %p121 = scmp.eq.s32.totalorder %s29, 0
      %p122 = por %p120, %p121
      %s123 = ssub.s32 %s30, %s42
      %s124 = ssub.s32 %s31, %s38
      %s125 = sor.u32 %s123, %s124
      %p126 = scmp.eq.s32.totalorder %s125, 0
      %s128 = sadd.s32 %s127, 1
      %s129 = scalar_select %p126, %s127, %s128
      %p132 = pneg %p126
      %p133 = scmp.eq.s32.totalorder %s23, 1
      %p134 = por %p132, %p133
      %p135 = scmp.ne.s32.totalorder %s127, %s130
      %p136 = scmp.eq.s32.totalorder %s23, 0
      %p137 = por %p135, %p136
      %p138 = scmp.ne.s32.totalorder %s127, %s130
      %p139 = scmp.eq.s32.totalorder %s28, 1
      %p140 = por %p138, %p139
      %p141 = scmp.ne.s32.totalorder %s130, %s131
      %p142 = scmp.eq.s32.totalorder %s28, 0
      %p143 = por %p141, %p142
      %p144 = scmp.ne.s32.totalorder %s130, %s131
      %p145 = scmp.eq.s32.totalorder %s29, 1
      %p146 = por %p144, %p145
      %p148 = scmp.ne.s32.totalorder %s131, %s147
      %p149 = scmp.eq.s32.totalorder %s29, 0
      %p150 = por %p148, %p149
      %s151 = ssub.s32 %s30, %s42
      %s152 = ssub.s32 %s31, %s38
      %s153 = sor.u32 %s151, %s152
      %p154 = scmp.eq.s32.totalorder %s153, 0
      %s156 = sadd.s32 %s155, 1
      %s157 = scalar_select %p154, %s155, %s156
      %p160 = pneg %p154
      %p161 = scmp.eq.s32.totalorder %s23, 1
      %p162 = por %p160, %p161
      %p163 = scmp.ne.s32.totalorder %s155, %s158
      %p164 = scmp.eq.s32.totalorder %s23, 0
      %p165 = por %p163, %p164
      %p166 = scmp.ne.s32.totalorder %s155, %s158
      %p167 = scmp.eq.s32.totalorder %s28, 1
      %p168 = por %p166, %p167
      %p169 = scmp.ne.s32.totalorder %s158, %s159
      %p170 = scmp.eq.s32.totalorder %s28, 0
      %p171 = por %p169, %p170
      %p172 = scmp.ne.s32.totalorder %s158, %s159
      %p173 = scmp.eq.s32.totalorder %s29, 1
      %p174 = por %p172, %p173
      %p176 = scmp.ne.s32.totalorder %s159, %s175
      %p177 = scmp.eq.s32.totalorder %s29, 0
      %p178 = por %p176, %p177
      %p179 = scmp.le.s32.totalorder 1, %s23
      %p180 = scmp.lt.s32.totalorder %s23, 3
      %p181 = pnand %p179, %p180
      %p182 = pneg %p181
      // Predicated region
      $region9: #{tpu_custom_call.1} parent=5 // pred_check
        _
      $region10: #{tpu_custom_call.1} parent=5 // pred_check_branch
        %184 = sbr.rel (%p181) target = $region12
      $region11: #{tpu_custom_call.1} parent=5 // pred_region
        %s185 = ssub.s32 %s23, 1
      $region12: #{tpu_custom_call.1} parent=5 // pred_fallthru
        _
      %p186 = scmp.lt.s32.totalorder %s23, 2
      // Predicated region
      $region13: #{tpu_custom_call.1} parent=5 // pred_check
        %p187 = pneg %p186
      $region14: #{tpu_custom_call.1} parent=5 // pred_check_branch
        %189 = sbr.rel (%p187) target = $region16
      $region15: #{tpu_custom_call.1} parent=5 // pred_region
        // Predicated region
        $region17: #{tpu_custom_call.1} parent=15 // pred_check
          %p190 = pneg %p57
        $region18: #{tpu_custom_call.1} parent=15 // pred_check_branch
          %192 = sbr.rel (%p190) target = $region20
        $region19: #{tpu_custom_call.1} parent=15 // pred_region
          %s193 = sand.u32 %s47, 1
          %s194 = scalar_lea.sflag [#allocation3], %s193
          %s195 = sand.u32 %s47, 1
          %s196 = smul.addr %s195, 8
          %s197 = scalar_lea.vmem [#allocation2], %s196
          %199 = vsyncadd %s194, 0
          %s200 = sadd.s32 %s31, %s30
          %s201 = smul.addr %s200, 8
          %s202 = scalar_lea.hbm %s0, %s201
          %s204 = sshll.u32 %s202, 4
          %s205 = int_to_ptr.hbm [resolvable:$true] %s204
          %s206 = sshll.u32 %s197, 4
          %s207 = int_to_ptr.vmem [resolvable:$true] %s206
          %209 = dma.hbm_to_vmem [thread:$0]  %s205, 128, %s207, %s194
        $region20: #{tpu_custom_call.1} parent=15 // pred_fallthru
          _
        // Predicated region
        $region21: #{tpu_custom_call.1} parent=15 // pred_check
          %p210 = pneg %p83
        $region22: #{tpu_custom_call.1} parent=15 // pred_check_branch
          %212 = sbr.rel (%p210) target = $region24
        $region23: #{tpu_custom_call.1} parent=15 // pred_region
          %s213 = sand.u32 %s23, 1
          %s214 = scalar_lea.sflag [#allocation6], %s213
          %s215 = sand.u32 %s73, 1
          %s216 = smul.addr %s215, 128
          %s217 = scalar_lea.vmem [#allocation5], %s216
          %219 = vsyncadd %s214, 0
          %s220 = smul.addr %s30, 16
          %s221 = smul.addr %s220, 8
          %s222 = scalar_lea.hbm %s1, %s221
          %s223 = sshll.u32 %s222, 4
          %s224 = int_to_ptr.hbm [resolvable:$true] %s223
          %s225 = sshll.u32 %s217, 4
          %s226 = int_to_ptr.vmem [resolvable:$true] %s225
          %231 = dma.hbm_to_vmem [thread:$0]  %s224, 2048, %s226, %s214, 128, 128, 8
        $region24: #{tpu_custom_call.1} parent=15 // pred_fallthru
          _
        // Predicated region
        $region25: #{tpu_custom_call.1} parent=15 // pred_check
          %p232 = pneg %p109
        $region26: #{tpu_custom_call.1} parent=15 // pred_check_branch
          %234 = sbr.rel (%p232) target = $region28
        $region27: #{tpu_custom_call.1} parent=15 // pred_region
          %s235 = sand.u32 %s23, 1
          %s236 = scalar_lea.sflag [#allocation6], %s235
          %s237 = sand.u32 %s99, 1
          %s238 = smul.addr %s237, 128
          %s239 = scalar_lea.vmem [#allocation7], %s238
          %241 = vsyncadd %s236, 0
          %s242 = smul.addr %s30, 16
          %s243 = smul.addr %s242, 8
          %s244 = scalar_lea.hbm %s2, %s243
          %s245 = sshll.u32 %s244, 4
          %s246 = int_to_ptr.hbm [resolvable:$true] %s245
          %s247 = sshll.u32 %s239, 4
          %s248 = int_to_ptr.vmem [resolvable:$true] %s247
          %253 = dma.hbm_to_vmem [thread:$0]  %s246, 2048, %s248, %s236, 128, 128, 8
        $region28: #{tpu_custom_call.1} parent=15 // pred_fallthru
          _
      $region16: #{tpu_custom_call.1} parent=5 // pred_fallthru
        _
      %p254 = scmp.le.s32.totalorder 1, %s23
      %p255 = scmp.lt.s32.totalorder %s23, 3
      %p256 = pnand %p254, %p255
      %p257 = pneg %p256
      // Predicated region
      $region29: #{tpu_custom_call.1} parent=5 // pred_check
        _
      $region30: #{tpu_custom_call.1} parent=5 // pred_check_branch
        %259 = sbr.rel (%p256) target = $region32
      $region31: #{tpu_custom_call.1} parent=5 // pred_region
        %s260 = ssub.s32 %s23, 1
        %s261 = sand.u32 %s50, 1
        %s262 = scalar_lea.sflag [#allocation3], %s261
        %s263 = sand.u32 %s50, 1
        %s264 = smul.addr %s263, 8
        %s265 = scalar_lea.vmem [#allocation2], %s264
        // Predicated region
        $region33: #{tpu_custom_call.1} parent=31 // pred_check
          %p266 = pneg %p63
        $region34: #{tpu_custom_call.1} parent=31 // pred_check_branch
          %268 = sbr.rel (%p266) target = $region36
        $region35: #{tpu_custom_call.1} parent=31 // pred_region
          %270 = dma.done %s262, 128
        $region36: #{tpu_custom_call.1} parent=31 // pred_fallthru
          _
        %s271 = sand.u32 %s28, 1
        %s272 = scalar_lea.sflag [#allocation6], %s271
        %s273 = sand.u32 %s76, 1
        %s274 = smul.addr %s273, 128
        %s275 = scalar_lea.vmem [#allocation5], %s274
        // Predicated region
        $region37: #{tpu_custom_call.1} parent=31 // pred_check
          %p276 = pneg %p89
        $region38: #{tpu_custom_call.1} parent=31 // pred_check_branch
          %278 = sbr.rel (%p276) target = $region40
        $region39: #{tpu_custom_call.1} parent=31 // pred_region
          %280 = dma.done %s272, 2048
        $region40: #{tpu_custom_call.1} parent=31 // pred_fallthru
          _
        %s281 = sand.u32 %s28, 1
        %s282 = scalar_lea.sflag [#allocation6], %s281
        %s283 = sand.u32 %s102, 1
        %s284 = smul.addr %s283, 128
        %s285 = scalar_lea.vmem [#allocation7], %s284
        // Predicated region
        $region41: #{tpu_custom_call.1} parent=31 // pred_check
          %p286 = pneg %p115
        $region42: #{tpu_custom_call.1} parent=31 // pred_check_branch
          %288 = sbr.rel (%p286) target = $region44
        $region43: #{tpu_custom_call.1} parent=31 // pred_region
          %290 = dma.done %s282, 2048
        $region44: #{tpu_custom_call.1} parent=31 // pred_fallthru
          _
        %s291 = sand.u32 %s50, 1
        %s292 = scalar_lea.sflag [#allocation3], %s291
        %s293 = sand.u32 %s50, 1
        %s294 = smul.addr %s293, 8
        %s295 = scalar_lea.vmem [#allocation2], %s294
        %p296 = pneg %p63
        %p297 = pneg %p60
        %s298 = sand.u32 %s28, 1
        %s299 = scalar_lea.sflag [#allocation6], %s298
        %s300 = sand.u32 %s76, 1
        %s301 = smul.addr %s300, 128
        %s302 = scalar_lea.vmem [#allocation5], %s301
        %p303 = pneg %p89
        %p304 = pneg %p86
        %s305 = sand.u32 %s28, 1
        %s306 = scalar_lea.sflag [#allocation6], %s305
        %s307 = sand.u32 %s102, 1
        %s308 = smul.addr %s307, 128
        %s309 = scalar_lea.vmem [#allocation7], %s308
        %p310 = pneg %p115
        %p311 = pneg %p112
        %p312 = pneg %p143
        %p313 = pneg %p140
        %s314 = sand.u32 %s130, 1
        %s315 = scalar_lea.sflag [#allocation4], %s314
        %s316 = sand.u32 %s130, 1
        %s317 = smul.addr %s316, 8
        %s318 = scalar_lea.vmem [#allocation8], %s317
        %p319 = pneg %p171
        %p320 = pneg %p168
        %s321 = sand.u32 %s158, 1
        %s322 = scalar_lea.sflag [#allocation10], %s321
        %s323 = sand.u32 %s158, 1
        %s324 = smul.addr %s323, 8
        %s325 = scalar_lea.vmem [#allocation9], %s324
        %v326 = vld [vmem:[%s265] sm:$0xff]
        %v327 = vmul.f32 %v326, 0.17677669
        %v328 = vld [vmem:[%s275] sm:$0xff]
        %v329 = vld [vmem:[%s275 + $0x8] sm:$0xff]
        %v330 = vld [vmem:[%s275 + $0x10] sm:$0xff]
        %v331 = vld [vmem:[%s275 + $0x18] sm:$0xff]
        %v332 = vld [vmem:[%s275 + $0x20] sm:$0xff]
        %v333 = vld [vmem:[%s275 + $0x28] sm:$0xff]
        %v334 = vld [vmem:[%s275 + $0x30] sm:$0xff]
        %v335 = vld [vmem:[%s275 + $0x38] sm:$0xff]
        %v336 = vld [vmem:[%s275 + $0x40] sm:$0xff]
        %v337 = vld [vmem:[%s275 + $0x48] sm:$0xff]
        %v338 = vld [vmem:[%s275 + $0x50] sm:$0xff]
        %v339 = vld [vmem:[%s275 + $0x58] sm:$0xff]
        %v340 = vld [vmem:[%s275 + $0x60] sm:$0xff]
        %v341 = vld [vmem:[%s275 + $0x68] sm:$0xff]
        %v342 = vld [vmem:[%s275 + $0x70] sm:$0xff]
        %v343 = vld [vmem:[%s275 + $0x78] sm:$0xff]
        %v344 = vld [vmem:[%s285] sm:$0xff]
        %v345 = vld [vmem:[%s285 + $0x8] sm:$0xff]
        %v346 = vld [vmem:[%s285 + $0x10] sm:$0xff]
        %v347 = vld [vmem:[%s285 + $0x18] sm:$0xff]
        %v348 = vld [vmem:[%s285 + $0x20] sm:$0xff]
        %v349 = vld [vmem:[%s285 + $0x28] sm:$0xff]
        %v350 = vld [vmem:[%s285 + $0x30] sm:$0xff]
        %v351 = vld [vmem:[%s285 + $0x38] sm:$0xff]
        %v352 = vld [vmem:[%s285 + $0x40] sm:$0xff]
        %v353 = vld [vmem:[%s285 + $0x48] sm:$0xff]
        %v354 = vld [vmem:[%s285 + $0x50] sm:$0xff]
        %v355 = vld [vmem:[%s285 + $0x58] sm:$0xff]
        %v356 = vld [vmem:[%s285 + $0x60] sm:$0xff]
        %v357 = vld [vmem:[%s285 + $0x68] sm:$0xff]
        %v358 = vld [vmem:[%s285 + $0x70] sm:$0xff]
        %v359 = vld [vmem:[%s285 + $0x78] sm:$0xff]
        %360 = vmatpush.xpose.msra.mxu0 %v343
        %361 = vmatpush.xpose.msra.mxu0 %v342
        %362 = vmatpush.xpose.msra.mxu0 %v341
        %363 = vmatpush.xpose.msra.mxu0 %v340
        %364 = vmatpush.xpose.msra.mxu0 %v339
        %365 = vmatpush.xpose.msra.mxu0 %v338
        %366 = vmatpush.xpose.msra.mxu0 %v337
        %367 = vmatpush.xpose.msra.mxu0 %v336
        %368 = vmatpush.xpose.msra.mxu0 %v335
        %369 = vmatpush.xpose.msra.mxu0 %v334
        %370 = vmatpush.xpose.msra.mxu0 %v333
        %371 = vmatpush.xpose.msra.mxu0 %v332
        %372 = vmatpush.xpose.msra.mxu0 %v331
        %373 = vmatpush.xpose.msra.mxu0 %v330
        %374 = vmatpush.xpose.msra.mxu0 %v329
        %375 = vmatpush.xpose.msra.mxu0 %v328
        %376 = vmatmul.f32.gmra.mxu0 %v327
        %v377 = vpop.f32.mrf.mxu0
        %v378 = vadd.f32 0.0, %v377
        %379 = vdwg.mxu0
        %v380 = vlaneseq
        %v381 = vand.u32 %v380, 127
        %vm382 = vcmp.lt.s32.totalorder %v381, 8
        %v383 = vsel %vm382, %v378, -1e+30
        %384 = vmax.xlane.f32.xlu0 %v383
        %v385 = vpop.xlane.xlu0 %384
        %v386 = vsub.f32 %v383, %v385
        %v387 = vmul.f32 %v386, 1.442695
        %v388 = vpow.pop %v387
        %389 = vadd.xlane.f32.xlu0 %v388
        %v390 = vpop.xlane.xlu0 %389
        %v391 = vrcp.pop %v390
        %v392 = vmul.f32 %v390, %v391
        %v393 = vsub.f32 1.0, %v392
        %v394 = vmul.f32 %v391, %v393
        %v395 = vadd.f32 %v391, %v394
        %vm396 = vweird.f32 %v390
        %vm397 = vweird.f32 %v391
        %vm398 = vmor %vm396, %vm397
        %v399 = vsel %vm398, %v391, %v395
        %v400 = vand.u32 2147483647, %v390
        %vm401 = vcmp.eq.f32.partialorder %v400, 8.507059e+37
        %v402 = vand.u32 %v390, 2147483648
        %v403 = vor.u32 1.1754944e-38, %v402
        %v404 = vsel %vm401, %v403, %v399
        %v405 = vmul.f32 %v388, %v404
        %406 = vmatpush.msra.mxu0 %v359
        %407 = vmatpush.msra.mxu0 %v358
        %408 = vmatpush.msra.mxu0 %v357
        %409 = vmatpush.msra.mxu0 %v356
        %410 = vmatpush.msra.mxu0 %v355
        %411 = vmatpush.msra.mxu0 %v354
        %412 = vmatpush.msra.mxu0 %v353
        %413 = vmatpush.msra.mxu0 %v352
        %414 = vmatpush.msra.mxu0 %v351
        %415 = vmatpush.msra.mxu0 %v350
        %416 = vmatpush.msra.mxu0 %v349
        %417 = vmatpush.msra.mxu0 %v348
        %418 = vmatpush.msra.mxu0 %v347
        %419 = vmatpush.msra.mxu0 %v346
        %420 = vmatpush.msra.mxu0 %v345
        %421 = vmatpush.msra.mxu0 %v344
        %422 = vmatmul.f32.gmra.mxu0 %v405
        %v423 = vpop.f32.mrf.mxu0
        %v424 = vadd.f32 0.0, %v423
        %425 = vdwg.mxu0
        %426 = vst [vmem:[%s318] sm:$0xff] %v424
        %427 = vst [vmem:[%s325] sm:$0xff] %v405
        %s428 = sand.u32 %s130, 1
        %s429 = scalar_lea.sflag [#allocation4], %s428
        %s430 = sand.u32 %s130, 1
        %s431 = smul.addr %s430, 8
        %s432 = scalar_lea.vmem [#allocation8], %s431
        %s433 = sand.u32 %s158, 1
        %s434 = scalar_lea.sflag [#allocation10], %s433
        %s435 = sand.u32 %s158, 1
        %s436 = smul.addr %s435, 8
        %s437 = scalar_lea.vmem [#allocation9], %s436
        // Predicated region
        $region45: #{tpu_custom_call.1} parent=31 // pred_check
          %p438 = pneg %p140
        $region46: #{tpu_custom_call.1} parent=31 // pred_check_branch
          %440 = sbr.rel (%p438) target = $region48
        $region47: #{tpu_custom_call.1} parent=31 // pred_region
          %442 = vsyncadd %s429, 0
          %s443 = sadd.s32 %s33, %s32
          %s444 = smul.addr %s443, 8
          %s445 = scalar_lea.hbm %s3, %s444
          %s447 = sshll.u32 %s432, 4
          %s448 = int_to_ptr.vmem [resolvable:$true] %s447
          %s449 = sshll.u32 %s445, 4
          %s450 = int_to_ptr.hbm [resolvable:$true] %s449
          %452 = dma.vmem_to_hbm [thread:$0]  %s448, 128, %s450, %s429
        $region48: #{tpu_custom_call.1} parent=31 // pred_fallthru
          _
        // Predicated region
        $region49: #{tpu_custom_call.1} parent=31 // pred_check
          %p453 = pneg %p168
        $region50: #{tpu_custom_call.1} parent=31 // pred_check_branch
          %455 = sbr.rel (%p453) target = $region52
        $region51: #{tpu_custom_call.1} parent=31 // pred_region
          %457 = vsyncadd %s434, 0
          %s458 = sadd.s32 %s33, %s32
          %s459 = smul.addr %s458, 8
          %s460 = scalar_lea.hbm %s4, %s459
          %s462 = sshll.u32 %s437, 4
          %s463 = int_to_ptr.vmem [resolvable:$true] %s462
          %s464 = sshll.u32 %s460, 4
          %s465 = int_to_ptr.hbm [resolvable:$true] %s464
          %467 = dma.vmem_to_hbm [thread:$0]  %s463, 128, %s465, %s434
        $region52: #{tpu_custom_call.1} parent=31 // pred_fallthru
          _
      $region32: #{tpu_custom_call.1} parent=5 // pred_fallthru
        _
      %p468 = scmp.le.s32.totalorder 2, %s23
      // Predicated region
      $region53: #{tpu_custom_call.1} parent=5 // pred_check
        %p469 = pneg %p468
      $region54: #{tpu_custom_call.1} parent=5 // pred_check_branch
        %471 = sbr.rel (%p469) target = $region56
      $region55: #{tpu_custom_call.1} parent=5 // pred_region
        %s472 = ssub.s32 %s23, 2
        // Predicated region
        $region57: #{tpu_custom_call.1} parent=55 // pred_check
          %p473 = pneg %p146
        $region58: #{tpu_custom_call.1} parent=55 // pred_check_branch
          %475 = sbr.rel (%p473) target = $region60
        $region59: #{tpu_custom_call.1} parent=55 // pred_region
          %s476 = sand.u32 %s131, 1
          %s477 = scalar_lea.sflag [#allocation4], %s476
          %s478 = sand.u32 %s131, 1
          %s479 = smul.addr %s478, 8
          %s480 = scalar_lea.vmem [#allocation8], %s479
          %482 = dma.done %s477, 128
        $region60: #{tpu_custom_call.1} parent=55 // pred_fallthru
          _
        // Predicated region
        $region61: #{tpu_custom_call.1} parent=55 // pred_check
          %p483 = pneg %p174
        $region62: #{tpu_custom_call.1} parent=55 // pred_check_branch
          %485 = sbr.rel (%p483) target = $region64
        $region63: #{tpu_custom_call.1} parent=55 // pred_region
          %s486 = sand.u32 %s159, 1
          %s487 = scalar_lea.sflag [#allocation10], %s486
          %s488 = sand.u32 %s159, 1
          %s489 = smul.addr %s488, 8
          %s490 = scalar_lea.vmem [#allocation9], %s489
          %492 = dma.done %s487, 128
        $region64: #{tpu_custom_call.1} parent=55 // pred_fallthru
          _
      $region56: #{tpu_custom_call.1} parent=5 // pred_fallthru
        _
    $region6: #{tpu_custom_call.1} parent=1 // loop_footer
      %s27 = sadd.s32 1, %s23
    $region7: #{tpu_custom_call.1} parent=1 // loop_footer_branch
      %22 = sbr.rel target = $region3
    $region8: #{tpu_custom_call.1} parent=1 // loop_exit
      _
    %493 = vsyncpa [#allocation3], 1
    %s494 = scalar_lea.sflag [#allocation3], 1
    %495 = vsyncpa %s494, 1
    %496 = vsyncpa [#allocation6], 1
    %s497 = scalar_lea.sflag [#allocation6], 1
    %498 = vsyncpa %s497, 1
    %499 = vsyncpa [#allocation4], 1
    %s500 = scalar_lea.sflag [#allocation4], 1
    %501 = vsyncpa %s500, 1
    %502 = vsyncpa [#allocation10], 1
    %s503 = scalar_lea.sflag [#allocation10], 1
    %504 = vsyncpa %s503, 1

</llo_original>
